<compile_context>
chip_gen: v5e
topology: v5e:2x2
jax: 0.10.0
libtpu: 0.0.40
codegen_flags: <defaults>
</compile_context>

<pallas_src>
import numpy as np
import jax
import jax.numpy as jnp
from jax.experimental import pallas as pl
from jax.experimental.pallas import tpu as pltpu


def _irev_downscale_kernel(x_ref, sel_ref, o_ref):
    # x_ref  : (Cblk*Hy, s*W)        rows = (c, hy), lanes = (sh, w)
    # sel_ref: (W, s*Wy)             one-hot width-phase selector (bf16)
    # o_ref  : (s, s, Cblk*Hy, Wy)   output slabs, indexed [sh, wi]
    s = o_ref.shape[0]
    y_w = o_ref.shape[-1]
    W = s * y_w
    sel = sel_ref[...]

    for sh in range(s):                       # static unroll over height phase
        a = x_ref[:, sh * W:(sh + 1) * W]     # (Cblk*Hy, W) static lane slice

        if a.dtype == jnp.float32:
            # Exact 3-way bf16 split: a == a1 + a2 + a3 bit-exactly for
            # finite, normal-range f32 (8+8+8 >= 24 mantissa bits).  Each
            # single-pass bf16 matmul with the one-hot selector is exact and
            # the f32 accumulation reconstructs the input exactly.
            a1 = a.astype(jnp.bfloat16)
            r1 = a - a1.astype(jnp.float32)
            a2 = r1.astype(jnp.bfloat16)
            a3 = (r1 - a2.astype(jnp.float32)).astype(jnp.bfloat16)
            res = (jnp.dot(a1, sel, preferred_element_type=jnp.float32)
                   + jnp.dot(a2, sel, preferred_element_type=jnp.float32)
                   + jnp.dot(a3, sel, preferred_element_type=jnp.float32))
        else:
            # bf16 inputs go through the MXU untruncated: single pass, exact.
            res = jnp.dot(a, sel, preferred_element_type=jnp.float32)

        # res[m, wi*Wy + wy] = x[b, c, hy*s + sh, wy*s + wi]   (m = c*Hy + hy)
        for wi in range(s):
            o_ref[sh, wi] = res[:, wi * y_w:(wi + 1) * y_w].astype(o_ref.dtype)


def _pick_channel_block(C, Hy, Wy, scale, itemsize, budget_bytes=12 << 20):
    """Largest legal channel block whose double-buffered in+out blocks fit the budget."""
    rup = lambda v, m: ((v + m - 1) // m) * m
    s = scale

    def footprint(cb):
        rows = rup(cb * Hy, 8)
        in_b = rows * rup(s * s * Wy, 128) * itemsize            # (Cblk*Hy, s*W)
        out_b = s * s * rows * rup(Wy, 128) * itemsize           # (s, s, Cblk*Hy, Wy)
        return 2 * (in_b + out_b)                                # double buffered

    # Keep the sublane (second-minor) block dim legal: multiple of 8 or full extent.
    cands = [d for d in range(C, 0, -1)
             if C % d == 0 and ((d * Hy) % 8 == 0 or d == C)]
    for d in cands:                     # descending: biggest block that fits
        if footprint(d) <= budget_bytes:
            return d
    return cands[-1]                    # smallest legal block (may exceed budget)


def irev_downscale(x, scale, *, cblk=None):
    """Pallas implementation of IRevDownscale.forward.  x: (B, C, H, W) NCHW."""
    B, C, H, W = x.shape
    s = int(scale)
    assert H % s == 0 and W % s == 0
    Hy, Wy = H // s, W // s

    if x.dtype not in (jnp.float32, jnp.bfloat16):
        # TODO(synk): integer / fp8 inputs need a gather-based lane
        # de-interleave (the MXU has no exact integer path); only f32/bf16.
        raise NotImplementedError(f"irev_downscale: unsupported dtype {x.dtype}")

    if cblk is None:
        cblk = _pick_channel_block(C, Hy, Wy, s, x.dtype.itemsize)
    assert C % cblk == 0

    # Free row-major reshape: x3[b, c*Hy + hy, sh*W + w] = x[b, c, hy*s + sh, w].
    x3 = x.reshape(B, C * Hy, s * W)

    # One-hot width-phase selector: sel[w, wi*Wy + wy] = (w == wy*s + wi).
    # Deterministic constant (the module has no weights); bf16 is exact for 0/1.
    sel_np = np.zeros((W, s * Wy), dtype=np.float32)
    for wi in range(s):
        sel_np[np.arange(Wy) * s + wi, wi * Wy + np.arange(Wy)] = 1.0
    sel = jnp.asarray(sel_np, dtype=jnp.bfloat16)

    grid = (B, C // cblk)   # (batch, channel block) — both independent

    out5 = pl.pallas_call(
        _irev_downscale_kernel,
        out_shape=jax.ShapeDtypeStruct((B, s, s, C * Hy, Wy), x.dtype),
        grid=grid,
        in_specs=[
            # Full (Cblk*Hy, s*W) slab: one contiguous HBM run per step; every
            # input element is DMA'd from HBM exactly once.
            pl.BlockSpec((None, cblk * Hy, s * W), lambda b, ci: (b, ci, 0)),
            # Constant-index selector: fetched once, resident for the whole grid.
            pl.BlockSpec((W, s * Wy), lambda b, ci: (0, 0)),
        ],
        # One (s, s, Cblk*Hy, Wy) output slab per step; each (sh, wi) sub-slab
        # is a contiguous HBM run of the final NCHW result.
        out_specs=pl.BlockSpec((None, s, s, cblk * Hy, Wy),
                               lambda b, ci: (b, 0, 0, ci, 0)),
        compiler_params=pltpu.CompilerParams(
            dimension_semantics=("parallel", "parallel"),
            vmem_limit_bytes=32 << 20),
        cost_estimate=pl.CostEstimate(
            flops=2 * x.size * W * (3 if x.dtype == jnp.float32 else 1),
            transcendentals=0,
            bytes_accessed=2 * x.size * x.dtype.itemsize),
    )(x3, sel)

    # (B, s, s, C*Hy, Wy) -> (B, s*s*C, Hy, Wy): free row-major reshape;
    # output channel = (sh*s + wi)*C + c, matching the PyTorch forward exactly.
    return out5.reshape(B, s * s * C, Hy, Wy)


def irev_downscale_ref(x, scale):
    """Pure-JAX reference mirroring the PyTorch forward semantics."""
    B, C, H, W = x.shape
    s = scale
    Hy, Wy = H // s, W // s
    x6 = x.reshape(B, C, Hy, s, Wy, s)                 # (b, c, hy, sh, wy, wi)
    y = jnp.transpose(x6, (0, 3, 5, 1, 2, 4))          # (b, sh, wi, c, hy, wy)
    return y.reshape(B, s * s * C, Hy, Wy)


if __name__ == "__main__":
    key = jax.random.PRNGKey(0)

    configs = [
        ((2, 4, 16, 16), 2, jnp.float32),
        ((2, 4, 16, 16), 2, jnp.bfloat16),
        ((2, 4, 16, 16), 4, jnp.float32),
    ]
    for (B, C, H, W), scale, dtype in configs:
        key, sub = jax.random.split(key)
        x = jax.random.normal(sub, (B, C, H, W), dtype=dtype)

        out = jax.block_until_ready(irev_downscale(x, scale))
        ref = irev_downscale_ref(x, scale)

        assert out.shape == (B, C * scale * scale, H // scale, W // scale), out.shape
        np.testing.assert_allclose(np.asarray(out, dtype=np.float32),
                                   np.asarray(ref, dtype=np.float32),
                                   rtol=1e-6, atol=1e-6)

    print("KERNEL_OK")
</pallas_src>

<mosaic_0001>
module attributes {stable_mosaic.version = 11 : i64} {
  func.func @_irev_downscale_kernel(%arg0: i32, %arg1: i32, %arg2: memref<1x32x32xf32, #tpu.memory_space<vmem>>, %arg3: memref<16x16xbf16, #tpu.memory_space<vmem>>, %arg4: memref<1x2x2x32x8xf32, #tpu.memory_space<vmem>>) attributes {dimension_semantics = [#tpu.dimension_semantics<parallel>, #tpu.dimension_semantics<parallel>], iteration_bounds = array<i64: 2, 1>, scalar_prefetch = 0 : i64, scratch_operands = 0 : i64, tpu.core_type = #tpu.core_type<tc>, window_params = [{transform_indices = @transform_0, window_bounds = array<i64: 1, 32, 32>}, {pipeline_mode = #tpu.pipeline_mode<synchronous>, transform_indices = @transform_1, window_bounds = array<i64: 16, 16>}, {transform_indices = @transform_2, window_bounds = array<i64: 1, 2, 2, 32, 8>}]} {
    %c0 = arith.constant 0 : index
    %c0_0 = arith.constant 0 : index
    %0 = vector.load %arg3[%c0, %c0_0] : memref<16x16xbf16, #tpu.memory_space<vmem>>, vector<16x16xbf16>
    %c0_1 = arith.constant 0 : index
    %c0_2 = arith.constant 0 : index
    %c0_3 = arith.constant 0 : index
    %1 = vector.load %arg2[%c0_1, %c0_2, %c0_3] : memref<1x32x32xf32, #tpu.memory_space<vmem>>, vector<1x32x16xf32>
    %2 = vector.shape_cast %1 : vector<1x32x16xf32> to vector<32x16xf32>
    %3 = arith.truncf %2 : vector<32x16xf32> to vector<32x16xbf16>
    %4 = arith.extf %3 : vector<32x16xbf16> to vector<32x16xf32>
    %5 = arith.subf %2, %4 : vector<32x16xf32>
    %6 = arith.truncf %5 : vector<32x16xf32> to vector<32x16xbf16>
    %7 = arith.extf %6 : vector<32x16xbf16> to vector<32x16xf32>
    %8 = arith.subf %5, %7 : vector<32x16xf32>
    %9 = arith.truncf %8 : vector<32x16xf32> to vector<32x16xbf16>
    %cst = arith.constant dense<0.000000e+00> : vector<32x16xf32>
    %10 = tpu.matmul %3, %0, %cst {dimension_numbers = #tpu.dot_dimension_numbers<[1], [0], [0], [1], [0, 0, 1, 1], [], []>} : vector<32x16xbf16>, vector<16x16xbf16>, vector<32x16xf32> -> vector<32x16xf32>
    %cst_4 = arith.constant dense<0.000000e+00> : vector<32x16xf32>
    %11 = tpu.matmul %6, %0, %cst_4 {dimension_numbers = #tpu.dot_dimension_numbers<[1], [0], [0], [1], [0, 0, 1, 1], [], []>} : vector<32x16xbf16>, vector<16x16xbf16>, vector<32x16xf32> -> vector<32x16xf32>
    %12 = arith.addf %10, %11 : vector<32x16xf32>
    %cst_5 = arith.constant dense<0.000000e+00> : vector<32x16xf32>
    %13 = tpu.matmul %9, %0, %cst_5 {dimension_numbers = #tpu.dot_dimension_numbers<[1], [0], [0], [1], [0, 0, 1, 1], [], []>} : vector<32x16xbf16>, vector<16x16xbf16>, vector<32x16xf32> -> vector<32x16xf32>
    %14 = arith.addf %12, %13 : vector<32x16xf32>
    %15 = vector.extract_strided_slice %14 {offsets = [0, 0], sizes = [32, 8], strides = [1, 1]} : vector<32x16xf32> to vector<32x8xf32>
    %c0_6 = arith.constant 0 : index
    %c0_7 = arith.constant 0 : index
    %c0_8 = arith.constant 0 : index
    %c0_9 = arith.constant 0 : index
    %c0_10 = arith.constant 0 : index
    %16 = vector.load %arg4[%c0_6, %c0_7, %c0_8, %c0_9, %c0_10] : memref<1x2x2x32x8xf32, #tpu.memory_space<vmem>>, vector<1x1x1x32x8xf32>
    %17 = vector.shape_cast %16 : vector<1x1x1x32x8xf32> to vector<32x8xf32>
    %18 = vector.shape_cast %15 : vector<32x8xf32> to vector<1x1x1x32x8xf32>
    tpu.vector_store %arg4[%c0_6, %c0_7, %c0_8, %c0_9, %c0_10], %18 {strides = array<i32>} : memref<1x2x2x32x8xf32, #tpu.memory_space<vmem>>, vector<1x1x1x32x8xf32>,
    %19 = vector.extract_strided_slice %14 {offsets = [0, 8], sizes = [32, 8], strides = [1, 1]} : vector<32x16xf32> to vector<32x8xf32>
    %c0_11 = arith.constant 0 : index
    %c0_12 = arith.constant 0 : index
    %c1 = arith.constant 1 : index
    %c0_13 = arith.constant 0 : index
    %c0_14 = arith.constant 0 : index
    %20 = vector.load %arg4[%c0_11, %c0_12, %c1, %c0_13, %c0_14] : memref<1x2x2x32x8xf32, #tpu.memory_space<vmem>>, vector<1x1x1x32x8xf32>
    %21 = vector.shape_cast %20 : vector<1x1x1x32x8xf32> to vector<32x8xf32>
    %22 = vector.shape_cast %19 : vector<32x8xf32> to vector<1x1x1x32x8xf32>
    tpu.vector_store %arg4[%c0_11, %c0_12, %c1, %c0_13, %c0_14], %22 {strides = array<i32>} : memref<1x2x2x32x8xf32, #tpu.memory_space<vmem>>, vector<1x1x1x32x8xf32>,
    %c0_15 = arith.constant 0 : index
    %c0_16 = arith.constant 0 : index
    %c16 = arith.constant 16 : index
    %23 = vector.load %arg2[%c0_15, %c0_16, %c16] : memref<1x32x32xf32, #tpu.memory_space<vmem>>, vector<1x32x16xf32>
    %24 = vector.shape_cast %23 : vector<1x32x16xf32> to vector<32x16xf32>
    %25 = arith.truncf %24 : vector<32x16xf32> to vector<32x16xbf16>
    %26 = arith.extf %25 : vector<32x16xbf16> to vector<32x16xf32>
    %27 = arith.subf %24, %26 : vector<32x16xf32>
    %28 = arith.truncf %27 : vector<32x16xf32> to vector<32x16xbf16>
    %29 = arith.extf %28 : vector<32x16xbf16> to vector<32x16xf32>
    %30 = arith.subf %27, %29 : vector<32x16xf32>
    %31 = arith.truncf %30 : vector<32x16xf32> to vector<32x16xbf16>
    %cst_17 = arith.constant dense<0.000000e+00> : vector<32x16xf32>
    %32 = tpu.matmul %25, %0, %cst_17 {dimension_numbers = #tpu.dot_dimension_numbers<[1], [0], [0], [1], [0, 0, 1, 1], [], []>} : vector<32x16xbf16>, vector<16x16xbf16>, vector<32x16xf32> -> vector<32x16xf32>
    %cst_18 = arith.constant dense<0.000000e+00> : vector<32x16xf32>
    %33 = tpu.matmul %28, %0, %cst_18 {dimension_numbers = #tpu.dot_dimension_numbers<[1], [0], [0], [1], [0, 0, 1, 1], [], []>} : vector<32x16xbf16>, vector<16x16xbf16>, vector<32x16xf32> -> vector<32x16xf32>
    %34 = arith.addf %32, %33 : vector<32x16xf32>
    %cst_19 = arith.constant dense<0.000000e+00> : vector<32x16xf32>
    %35 = tpu.matmul %31, %0, %cst_19 {dimension_numbers = #tpu.dot_dimension_numbers<[1], [0], [0], [1], [0, 0, 1, 1], [], []>} : vector<32x16xbf16>, vector<16x16xbf16>, vector<32x16xf32> -> vector<32x16xf32>
    %36 = arith.addf %34, %35 : vector<32x16xf32>
    %37 = vector.extract_strided_slice %36 {offsets = [0, 0], sizes = [32, 8], strides = [1, 1]} : vector<32x16xf32> to vector<32x8xf32>
    %c0_20 = arith.constant 0 : index
    %c1_21 = arith.constant 1 : index
    %c0_22 = arith.constant 0 : index
    %c0_23 = arith.constant 0 : index
    %c0_24 = arith.constant 0 : index
    %38 = vector.load %arg4[%c0_20, %c1_21, %c0_22, %c0_23, %c0_24] : memref<1x2x2x32x8xf32, #tpu.memory_space<vmem>>, vector<1x1x1x32x8xf32>
    %39 = vector.shape_cast %38 : vector<1x1x1x32x8xf32> to vector<32x8xf32>
    %40 = vector.shape_cast %37 : vector<32x8xf32> to vector<1x1x1x32x8xf32>
    tpu.vector_store %arg4[%c0_20, %c1_21, %c0_22, %c0_23, %c0_24], %40 {strides = array<i32>} : memref<1x2x2x32x8xf32, #tpu.memory_space<vmem>>, vector<1x1x1x32x8xf32>,
    %41 = vector.extract_strided_slice %36 {offsets = [0, 8], sizes = [32, 8], strides = [1, 1]} : vector<32x16xf32> to vector<32x8xf32>
    %c0_25 = arith.constant 0 : index
    %c1_26 = arith.constant 1 : index
    %c1_27 = arith.constant 1 : index
    %c0_28 = arith.constant 0 : index
    %c0_29 = arith.constant 0 : index
    %42 = vector.load %arg4[%c0_25, %c1_26, %c1_27, %c0_28, %c0_29] : memref<1x2x2x32x8xf32, #tpu.memory_space<vmem>>, vector<1x1x1x32x8xf32>
    %43 = vector.shape_cast %42 : vector<1x1x1x32x8xf32> to vector<32x8xf32>
    %44 = vector.shape_cast %41 : vector<32x8xf32> to vector<1x1x1x32x8xf32>
    tpu.vector_store %arg4[%c0_25, %c1_26, %c1_27, %c0_28, %c0_29], %44 {strides = array<i32>} : memref<1x2x2x32x8xf32, #tpu.memory_space<vmem>>, vector<1x1x1x32x8xf32>,
    return
  }
  func.func @transform_0(%arg0: i32, %arg1: i32) -> (i32, i32, i32) {
    %c0_i32 = arith.constant 0 : i32
    %c0_i32_0 = arith.constant 0 : i32
    return %arg0, %arg1, %c0_i32 : i32, i32, i32
  }
  func.func @transform_1(%arg0: i32, %arg1: i32) -> (i32, i32) {
    %c0_i32 = arith.constant 0 : i32
    %c0_i32_0 = arith.constant 0 : i32
    %c0_i32_1 = arith.constant 0 : i32
    return %c0_i32, %c0_i32_0 : i32, i32
  }
  func.func @transform_2(%arg0: i32, %arg1: i32) -> (i32, i32, i32, i32, i32) {
    %c0_i32 = arith.constant 0 : i32
    %c0_i32_0 = arith.constant 0 : i32
    %c0_i32_1 = arith.constant 0 : i32
    %c0_i32_2 = arith.constant 0 : i32
    return %arg0, %c0_i32, %c0_i32_0, %arg1, %c0_i32_1 : i32, i32, i32, i32, i32
  }
}

</mosaic_0001>

<llo_original>
// kernel: tpu_custom_call.1
$region0: #{tpu_custom_call.1}
  #allocation0 [shape = 'u32[]', space=smem, size = 0x4, offset = 0x4, fixed_abs, tag = 'smem constant byte address 0x4 - core index']
  #allocation1 [shape = 'u32[72,128]{1,0:T(1,128)}', space=vmem, size = 0x9000, scoped, tag = 'internal scratch']
  %s0 = inlined_call_operand.hbm [shape: f32[2,32,32], index: 0, kind: input, shape index: {}]
  %s1 = inlined_call_operand.hbm [shape: bf16[16,16], index: 1, kind: input, shape index: {}]
  %s2 = inlined_call_operand.vmem [shape: f32[2,2,2,32,8], index: 2, kind: output, shape index: {}]
  %s3 = sld [smem:[#allocation0]]
  $region49: #{tpu_custom_call.1} parent=0
    _
  %s5 = ssub.s32 1, %s3
  %s6 = scalar_select 0, %s5, %s3
  $region1: #{tpu_custom_call.1} parent=0
    #allocation2 [shape = 'u8[32768]{0}', space=vmem, size = 0x8000, scoped, tag = 'input window, operand 0']
    #allocation3 [shape = 's32[2]{0}', space=sflag, size = 0x8, scoped, tag = 'scoped memory for tpu_custom_call.1']
    #allocation4 [shape = 'u8[4096]{0}', space=vmem, size = 0x1000, scoped, tag = 'input window, operand 1, single buffered']
    #allocation5 [shape = 's32[1]{0}', space=sflag, size = 0x4, scoped, tag = 'scoped memory for tpu_custom_call.1']
    %7 = vsyncpa [#allocation3], 0
    %s8 = scalar_lea.sflag [#allocation3], 1
    %9 = vsyncpa %s8, 0
    %10 = vsyncpa [#allocation5], 0
    loop: start=0, step=1, limit=4
    $region2: #{tpu_custom_call.1} parent=1 // loop_pre_header
      _
    $region3: #{tpu_custom_call.1} parent=1 // loop_header
      %s12 = sphi 0, %s16
      %p13 = scmp.ge.s32.totalorder %s12, 4
      %s19 = sphi 0, %s31
      %s20 = sphi 0, %s27
      %s21 = sphi 0, %s19
      %s22 = sphi 0, %s20
      %s23 = sphi 0, %s21
      %s24 = sphi 0, %s22
      %s36 = sphi 0, %s38
      %s39 = sphi 0, %s36
      %s40 = sphi 0, %s39
      %s56 = sphi 0, %s40
      %s60 = sphi 0, %s60
      %s62 = sphi 0, %s60
      %s63 = sphi 0, %s62
      %s77 = sphi 0, %s63
      %s85 = sphi 0, %s87
      %s88 = sphi 0, %s85
      %s89 = sphi 0, %s88
      %s105 = sphi 0, %s89
    $region4: #{tpu_custom_call.1} parent=1 // loop_header_branch
      %15 = sbr.rel (%p13) target = $region8
    $region5: #{tpu_custom_call.1} parent=1 // loop_body
      %s17 = ssub.s32 %s12, 1
      %s18 = ssub.s32 %s12, 2
      %s25 = sadd.s32 1, %s20
      %p26 = scmp.ge.s32.totalorder %s25, 1
      %s27 = scalar_select %p26, 0, %s25
      %s28 = sadd.s32 1, %s19
      %s29 = scalar_select %p26, %s28, %s19
      %p30 = scmp.ge.s32.totalorder %s29, 2
      %s31 = scalar_select %p30, 0, %s29
      %s32 = ssub.s32 %s19, %s31
      %s33 = ssub.s32 %s20, %s27
      %s34 = sor.u32 %s32, %s33
      %p35 = scmp.eq.s32.totalorder %s34, 0
      %s37 = sadd.s32 %s36, 1
      %s38 = scalar_select %p35, %s36, %s37
      %p41 = pneg %p35
      %p42 = scmp.eq.s32.totalorder %s12, 1
      %p43 = por %p41, %p42
      %p44 = scmp.ne.s32.totalorder %s36, %s39
      %p45 = scmp.eq.s32.totalorder %s12, 0
      %p46 = por %p44, %p45
      %p47 = scmp.ne.s32.totalorder %s36, %s39
      %p48 = scmp.eq.s32.totalorder %s17, 1
      %p49 = por %p47, %p48
      %p50 = scmp.ne.s32.totalorder %s39, %s40
      %p51 = scmp.eq.s32.totalorder %s17, 0
      %p52 = por %p50, %p51
      %p53 = scmp.ne.s32.totalorder %s39, %s40
      %p54 = scmp.eq.s32.totalorder %s18, 1
      %p55 = por %p53, %p54
      %p57 = scmp.ne.s32.totalorder %s40, %s56
      %p58 = scmp.eq.s32.totalorder %s18, 0
      %p59 = por %p57, %p58
      %s61 = sadd.s32 %s60, 1
      %p64 = scmp.eq.s32.totalorder %s12, 1
      %p65 = scmp.ne.s32.totalorder %s60, %s62
      %p66 = scmp.eq.s32.totalorder %s12, 0
      %p67 = por %p65, %p66
      %p68 = scmp.ne.s32.totalorder %s60, %s62
      %p69 = scmp.eq.s32.totalorder %s17, 1
      %p70 = por %p68, %p69
      %p71 = scmp.ne.s32.totalorder %s62, %s63
      %p72 = scmp.eq.s32.totalorder %s17, 0
      %p73 = por %p71, %p72
      %p74 = scmp.ne.s32.totalorder %s62, %s63
      %p75 = scmp.eq.s32.totalorder %s18, 1
      %p76 = por %p74, %p75
      %p78 = scmp.ne.s32.totalorder %s63, %s77
      %p79 = scmp.eq.s32.totalorder %s18, 0
      %p80 = por %p78, %p79
      %s81 = ssub.s32 %s19, %s31
      %s82 = ssub.s32 %s20, %s27
      %s83 = sor.u32 %s81, %s82
      %p84 = scmp.eq.s32.totalorder %s83, 0
      %s86 = sadd.s32 %s85, 1
      %s87 = scalar_select %p84, %s85, %s86
      %p90 = pneg %p84
      %p91 = scmp.eq.s32.totalorder %s12, 1
      %p92 = por %p90, %p91
      %p93 = scmp.ne.s32.totalorder %s85, %s88
      %p94 = scmp.eq.s32.totalorder %s12, 0
      %p95 = por %p93, %p94
      %p96 = scmp.ne.s32.totalorder %s85, %s88
      %p97 = scmp.eq.s32.totalorder %s17, 1
      %p98 = por %p96, %p97
      %p99 = scmp.ne.s32.totalorder %s88, %s89
      %p100 = scmp.eq.s32.totalorder %s17, 0
      %p101 = por %p99, %p100
      %p102 = scmp.ne.s32.totalorder %s88, %s89
      %p103 = scmp.eq.s32.totalorder %s18, 1
      %p104 = por %p102, %p103
      %p106 = scmp.ne.s32.totalorder %s89, %s105
      %p107 = scmp.eq.s32.totalorder %s18, 0
      %p108 = por %p106, %p107
      %p109 = scmp.le.s32.totalorder 1, %s12
      %p110 = scmp.lt.s32.totalorder %s12, 3
      %p111 = pnand %p109, %p110
      %p112 = pneg %p111
      // Predicated region
      $region9: #{tpu_custom_call.1} parent=5 // pred_check
        _
      $region10: #{tpu_custom_call.1} parent=5 // pred_check_branch
        %114 = sbr.rel (%p111) target = $region12
      $region11: #{tpu_custom_call.1} parent=5 // pred_region
        %s115 = ssub.s32 %s12, 1
        // Predicated region
        $region13: #{tpu_custom_call.1} parent=11 // pred_check
          %p116 = pneg %p73
        $region14: #{tpu_custom_call.1} parent=11 // pred_check_branch
          %118 = sbr.rel (%p116) target = $region16
        $region15: #{tpu_custom_call.1} parent=11 // pred_region
          %120 = vsyncadd [#allocation5], 0
          %s121 = sshll.u32 %s1, 4
          %s122 = int_to_ptr.hbm [resolvable:$true] %s121
          %s123 = sshll.u32 [#allocation4], 4
          %s124 = int_to_ptr.vmem [resolvable:$true] %s123
          %129 = dma.hbm_to_vmem [thread:$0]  %s122, 128, %s124, [#allocation5], 64, 64, 4
        $region16: #{tpu_custom_call.1} parent=11 // pred_fallthru
          _
      $region12: #{tpu_custom_call.1} parent=5 // pred_fallthru
        _
      %p130 = scmp.lt.s32.totalorder %s12, 2
      // Predicated region
      $region17: #{tpu_custom_call.1} parent=5 // pred_check
        %p131 = pneg %p130
      $region18: #{tpu_custom_call.1} parent=5 // pred_check_branch
        %133 = sbr.rel (%p131) target = $region20
      $region19: #{tpu_custom_call.1} parent=5 // pred_region
        // Predicated region
        $region21: #{tpu_custom_call.1} parent=19 // pred_check
          %p134 = pneg %p46
        $region22: #{tpu_custom_call.1} parent=19 // pred_check_branch
          %136 = sbr.rel (%p134) target = $region24
        $region23: #{tpu_custom_call.1} parent=19 // pred_region
          %s137 = sand.u32 %s36, 1
          %s138 = scalar_lea.sflag [#allocation3], %s137
          %s139 = sand.u32 %s36, 1
          %s140 = smul.addr %s139, 32
          %s141 = scalar_lea.vmem [#allocation2], %s140
          %s142 = smul.u32 4, %s20
          %144 = vsyncadd %s138, 0
          %s145 = smul.addr %s19, 4
          %s146 = sadd.s32 %s142, %s145
          %s147 = smul.addr %s146, 8
          %s148 = scalar_lea.hbm %s0, %s147
          %s149 = sshll.u32 %s148, 4
          %s150 = int_to_ptr.hbm [resolvable:$true] %s149
          %s151 = sshll.u32 %s141, 4
          %s152 = int_to_ptr.vmem [resolvable:$true] %s151
          %157 = dma.hbm_to_vmem [thread:$0]  %s150, 512, %s152, %s138, 128, 128, 8
        $region24: #{tpu_custom_call.1} parent=19 // pred_fallthru
          _
      $region20: #{tpu_custom_call.1} parent=5 // pred_fallthru
        _
      %p158 = scmp.le.s32.totalorder 1, %s12
      %p159 = scmp.lt.s32.totalorder %s12, 3
      %p160 = pnand %p158, %p159
      %p161 = pneg %p160
      // Predicated region
      $region25: #{tpu_custom_call.1} parent=5 // pred_check
        _
      $region26: #{tpu_custom_call.1} parent=5 // pred_check_branch
        %163 = sbr.rel (%p160) target = $region28
      $region27: #{tpu_custom_call.1} parent=5 // pred_region
        %s164 = ssub.s32 %s12, 1
        %s165 = sand.u32 %s39, 1
        %s166 = scalar_lea.sflag [#allocation3], %s165
        %s167 = sand.u32 %s39, 1
        %s168 = smul.addr %s167, 32
        %s169 = scalar_lea.vmem [#allocation2], %s168
        // Predicated region
        $region29: #{tpu_custom_call.1} parent=27 // pred_check
          %p170 = pneg %p52
        $region30: #{tpu_custom_call.1} parent=27 // pred_check_branch
          %172 = sbr.rel (%p170) target = $region32
        $region31: #{tpu_custom_call.1} parent=27 // pred_region
          %174 = dma.done %s166, 512
        $region32: #{tpu_custom_call.1} parent=27 // pred_fallthru
          _
        // Predicated region
        $region33: #{tpu_custom_call.1} parent=27 // pred_check
          %p175 = pneg %p73
        $region34: #{tpu_custom_call.1} parent=27 // pred_check_branch
          %177 = sbr.rel (%p175) target = $region36
        $region35: #{tpu_custom_call.1} parent=27 // pred_region
          %179 = dma.done [#allocation5], 128
        $region36: #{tpu_custom_call.1} parent=27 // pred_fallthru
          _
        %s180 = sand.u32 %s39, 1
        %s181 = scalar_lea.sflag [#allocation3], %s180
        %s182 = sand.u32 %s39, 1
        %s183 = smul.addr %s182, 32
        %s184 = scalar_lea.vmem [#allocation2], %s183
        %p185 = pneg %p52
        %p186 = pneg %p49
        %p187 = pneg %p73
        %p188 = pneg %p70
        %p189 = pneg %p101
        %p190 = pneg %p98
        %s191 = smul.u32 4, %s22
        %p192 = scmp.lt.s32.totalorder %s21, 1
        %s193 = scalar_select %p192, %s21, 1
        %p194 = scmp.lt.s32.totalorder %s191, 3
        %s195 = scalar_select %p194, %s191, 3
        %s196 = smul.addr %s193, 16
        %s197 = sadd.s32 %s195, %s196
        %s198 = smul.addr %s197, 8
        %s199 = scalar_lea.vmem %s2, %s198
        %s200 = smul.u32 4, %s22
        %s201 = smul.u32 4, %s22
        %p202 = scmp.lt.s32.totalorder %s21, 1
        %s203 = scalar_select %p202, %s21, 1
        %p204 = scmp.lt.s32.totalorder %s201, 3
        %s205 = scalar_select %p204, %s201, 3
        %s206 = smul.addr %s203, 16
        %s207 = sadd.s32 %s205, %s206
        %s208 = smul.addr %s207, 8
        %s209 = scalar_lea.vmem %s2, %s208
        %s210 = smul.u32 4, %s22
        %v212 = vld [vmem:[#allocation4] sm:$0xf]
        %v213 = vld [vmem:[#allocation4 + $0x4] sm:$0xf]
        %v214 = vld [vmem:[%s169] sm:$0xff]
        %v215 = vld [vmem:[%s169 + $0x8] sm:$0xff]
        %v216 = vld [vmem:[%s169 + $0x10] sm:$0xff]
        %v217 = vld [vmem:[%s169 + $0x18] sm:$0xff]
        %v218 = vpack.c.bf16 %v214, %v214
        %v219 = vpack.c.bf16 %v215, %v215
        %v220 = vpack.c.bf16 %v216, %v216
        %v221 = vpack.c.bf16 %v217, %v217
        %v222 = vunpack.c.l.bf16 %v218
        %v223 = vunpack.c.l.bf16 %v219
        %v224 = vunpack.c.l.bf16 %v220
        %v225 = vunpack.c.l.bf16 %v221
        %v226 = vsub.f32 %v214, %v222
        %v227 = vsub.f32 %v215, %v223
        %v228 = vsub.f32 %v216, %v224
        %v229 = vsub.f32 %v217, %v225
        %v230 = vpack.c.bf16 %v226, %v226
        %v231 = vpack.c.bf16 %v227, %v227
        %v232 = vpack.c.bf16 %v228, %v228
        %v233 = vpack.c.bf16 %v229, %v229
        %v234 = vunpack.c.l.bf16 %v230
        %v235 = vunpack.c.l.bf16 %v231
        %v236 = vunpack.c.l.bf16 %v232
        %v237 = vunpack.c.l.bf16 %v233
        %v238 = vsub.f32 %v226, %v234
        %v239 = vsub.f32 %v227, %v235
        %v240 = vsub.f32 %v228, %v236
        %v241 = vsub.f32 %v229, %v237
        %v242 = vpack.c.bf16 %v239, %v238
        %v243 = vpack.c.bf16 %v241, %v240
        %v248 = vunpack.c.l.b16 %v230
        %v249 = vunpack.c.l.b16 %v231
        %v250 = vunpack.c.l.b16 %v232
        %v251 = vunpack.c.l.b16 %v233
        %v252 = vpack.c.b16 %v249, %v248
        %v253 = vpack.c.b16 %v251, %v250
        %v256 = vunpack.c.l.b16 %v212
        %v257 = vunpack.c.l.b16 %v213
        %v258 = vpack.c.b16 %v257, %v256
        %vm260 = vcmask 130048
        %v262 = vsel %vm260, %v252, 0
        %v265 = vsel %vm260, %v253, 0
        %267 = vmatpush.bf16.msra.mxu0 0
        %268 = vmatpush.bf16.msra.mxu0 0
        %269 = vmatpush.bf16.msra.mxu0 0
        %270 = vmatpush.bf16.msra.mxu0 0
        %271 = vmatpush.bf16.msra.mxu0 0
        %272 = vmatpush.bf16.msra.mxu0 0
        %273 = vmatpush.bf16.msra.mxu0 0
        %274 = vmatpush.bf16.msra.mxu0 %v258
        %275 = vmatmul.bf16.gmra.mxu0 %v262
        %v276 = vpop.f32.mrf.mxu0
        %v277 = vadd.f32 0.0, %v276
        %v278 = vpop.f32.mrf.mxu0
        %v279 = vadd.f32 0.0, %v278
        %280 = vmatmul.bf16.gmra.mxu0 %v265
        %v281 = vpop.f32.mrf.mxu0
        %v282 = vadd.f32 0.0, %v281
        %v283 = vpop.f32.mrf.mxu0
        %v284 = vadd.f32 0.0, %v283
        %285 = vdwg.mxu0
        %v290 = vunpack.c.l.b16 %v218
        %v291 = vunpack.c.l.b16 %v219
        %v292 = vunpack.c.l.b16 %v220
        %v293 = vunpack.c.l.b16 %v221
        %v294 = vpack.c.b16 %v291, %v290
        %v295 = vpack.c.b16 %v293, %v292
        %v297 = vsel %vm260, %v294, 0
        %v300 = vsel %vm260, %v295, 0
        %302 = vmatpush.bf16.msra.mxu0 0
        %303 = vmatpush.bf16.msra.mxu0 0
        %304 = vmatpush.bf16.msra.mxu0 0
        %305 = vmatpush.bf16.msra.mxu0 0
        %306 = vmatpush.bf16.msra.mxu0 0
        %307 = vmatpush.bf16.msra.mxu0 0
        %308 = vmatpush.bf16.msra.mxu0 0
        %309 = vmatpush.bf16.msra.mxu0 %v258
        %310 = vmatmul.bf16.gmra.mxu0 %v297
        %v311 = vpop.f32.mrf.mxu0
        %v312 = vadd.f32 %v277, %v311
        %v313 = vpop.f32.mrf.mxu0
        %v314 = vadd.f32 %v279, %v313
        %315 = vmatmul.bf16.gmra.mxu0 %v300
        %v316 = vpop.f32.mrf.mxu0
        %v317 = vadd.f32 %v282, %v316
        %v318 = vpop.f32.mrf.mxu0
        %v319 = vadd.f32 %v284, %v318
        %320 = vdwg.mxu0
        %v322 = vsel %vm260, %v242, 0
        %v325 = vsel %vm260, %v243, 0
        %327 = vmatpush.bf16.msra.mxu0 0
        %328 = vmatpush.bf16.msra.mxu0 0
        %329 = vmatpush.bf16.msra.mxu0 0
        %330 = vmatpush.bf16.msra.mxu0 0
        %331 = vmatpush.bf16.msra.mxu0 0
        %332 = vmatpush.bf16.msra.mxu0 0
        %333 = vmatpush.bf16.msra.mxu0 0
        %334 = vmatpush.bf16.msra.mxu0 %v258
        %335 = vmatmul.bf16.gmra.mxu0 %v322
        %v336 = vpop.f32.mrf.mxu0
        %v337 = vadd.f32 0.0, %v336
        %v338 = vpop.f32.mrf.mxu0
        %v339 = vadd.f32 0.0, %v338
        %340 = vmatmul.bf16.gmra.mxu0 %v325
        %v341 = vpop.f32.mrf.mxu0
        %v342 = vadd.f32 0.0, %v341
        %v343 = vpop.f32.mrf.mxu0
        %v344 = vadd.f32 0.0, %v343
        %345 = vdwg.mxu0
        %v346 = vadd.f32 %v312, %v337
        %v347 = vadd.f32 %v314, %v339
        %v348 = vadd.f32 %v317, %v342
        %v349 = vadd.f32 %v319, %v344
        %vm350 = vcmask 64512
        %351 = vst.msk [vmem:[%s209] sm:$0xff] %vm350, %v346
        %352 = vst.msk [vmem:[%s209 + $0x8] sm:$0xff] %vm350, %v347
        %353 = vst.msk [vmem:[%s209 + $0x10] sm:$0xff] %vm350, %v348
        %354 = vst.msk [vmem:[%s209 + $0x18] sm:$0xff] %vm350, %v349
        %359 = vrot.lane.b32.xlu0 %v346, 120
        %v360 = vpop.permute.xlu0 %359
        %361 = vrot.lane.b32.xlu0 %v347, 120
        %v362 = vpop.permute.xlu0 %361
        %363 = vrot.lane.b32.xlu0 %v348, 120
        %v364 = vpop.permute.xlu0 %363
        %365 = vrot.lane.b32.xlu0 %v349, 120
        %v366 = vpop.permute.xlu0 %365
        %s371 = scalar_lea.vmem %s209, 32
        %372 = vst.msk [vmem:[%s371] sm:$0xff] %vm350, %v360
        %373 = vst.msk [vmem:[%s371 + $0x8] sm:$0xff] %vm350, %v362
        %374 = vst.msk [vmem:[%s371 + $0x10] sm:$0xff] %vm350, %v364
        %375 = vst.msk [vmem:[%s371 + $0x18] sm:$0xff] %vm350, %v366
        %v376 = vld [vmem:[%s169] sm:$0xff]
        %v377 = vld [vmem:[%s169 + $0x8] sm:$0xff]
        %v378 = vld [vmem:[%s169 + $0x10] sm:$0xff]
        %v379 = vld [vmem:[%s169 + $0x18] sm:$0xff]
        %v380 = vpack.c.bf16 %v376, %v376
        %v381 = vpack.c.bf16 %v377, %v377
        %v382 = vpack.c.bf16 %v378, %v378
        %v383 = vpack.c.bf16 %v379, %v379
        %v384 = vunpack.c.l.bf16 %v380
        %v385 = vunpack.c.l.bf16 %v381
        %v386 = vunpack.c.l.bf16 %v382
        %v387 = vunpack.c.l.bf16 %v383
        %v388 = vsub.f32 %v376, %v384
        %v389 = vsub.f32 %v377, %v385
        %v390 = vsub.f32 %v378, %v386
        %v391 = vsub.f32 %v379, %v387
        %v392 = vpack.c.bf16 %v388, %v388
        %v393 = vpack.c.bf16 %v389, %v389
        %v394 = vpack.c.bf16 %v390, %v390
        %v395 = vpack.c.bf16 %v391, %v391
        %v396 = vunpack.c.l.bf16 %v392
        %v397 = vunpack.c.l.bf16 %v393
        %v398 = vunpack.c.l.bf16 %v394
        %v399 = vunpack.c.l.bf16 %v395
        %v400 = vsub.f32 %v388, %v396
        %v401 = vsub.f32 %v389, %v397
        %v402 = vsub.f32 %v390, %v398
        %v403 = vsub.f32 %v391, %v399
        %v404 = vpack.c.bf16 %v401, %v400
        %v405 = vpack.c.bf16 %v403, %v402
        %v410 = vunpack.c.l.b16 %v392
        %v411 = vunpack.c.l.b16 %v393
        %v412 = vunpack.c.l.b16 %v394
        %v413 = vunpack.c.l.b16 %v395
        %v414 = vpack.c.b16 %v411, %v410
        %v415 = vpack.c.b16 %v413, %v412
        %416 = vrot.lane.b32.xlu0 %v414, 112
        %v417 = vpop.permute.xlu0 %416
        %418 = vrot.lane.b32.xlu0 %v415, 112
        %v419 = vpop.permute.xlu0 %418
        %v421 = vsel %vm260, %v417, 0
        %v424 = vsel %vm260, %v419, 0
        %426 = vmatpush.bf16.msra.mxu0 0
        %427 = vmatpush.bf16.msra.mxu0 0
        %428 = vmatpush.bf16.msra.mxu0 0
        %429 = vmatpush.bf16.msra.mxu0 0
        %430 = vmatpush.bf16.msra.mxu0 0
        %431 = vmatpush.bf16.msra.mxu0 0
        %432 = vmatpush.bf16.msra.mxu0 0
        %433 = vmatpush.bf16.msra.mxu0 %v258
        %434 = vmatmul.bf16.gmra.mxu0 %v421
        %v435 = vpop.f32.mrf.mxu0
        %v436 = vadd.f32 0.0, %v435
        %v437 = vpop.f32.mrf.mxu0
        %v438 = vadd.f32 0.0, %v437
        %439 = vmatmul.bf16.gmra.mxu0 %v424
        %v440 = vpop.f32.mrf.mxu0
        %v441 = vadd.f32 0.0, %v440
        %v442 = vpop.f32.mrf.mxu0
        %v443 = vadd.f32 0.0, %v442
        %444 = vdwg.mxu0
        %v449 = vunpack.c.l.b16 %v380
        %v450 = vunpack.c.l.b16 %v381
        %v451 = vunpack.c.l.b16 %v382
        %v452 = vunpack.c.l.b16 %v383
        %v453 = vpack.c.b16 %v450, %v449
        %v454 = vpack.c.b16 %v452, %v451
        %455 = vrot.lane.b32.xlu0 %v453, 112
        %v456 = vpop.permute.xlu0 %455
        %457 = vrot.lane.b32.xlu0 %v454, 112
        %v458 = vpop.permute.xlu0 %457
        %v460 = vsel %vm260, %v456, 0
        %v463 = vsel %vm260, %v458, 0
        %465 = vmatpush.bf16.msra.mxu0 0
        %466 = vmatpush.bf16.msra.mxu0 0
        %467 = vmatpush.bf16.msra.mxu0 0
        %468 = vmatpush.bf16.msra.mxu0 0
        %469 = vmatpush.bf16.msra.mxu0 0
        %470 = vmatpush.bf16.msra.mxu0 0
        %471 = vmatpush.bf16.msra.mxu0 0
        %472 = vmatpush.bf16.msra.mxu0 %v258
        %473 = vmatmul.bf16.gmra.mxu0 %v460
        %v474 = vpop.f32.mrf.mxu0
        %v475 = vadd.f32 %v436, %v474
        %v476 = vpop.f32.mrf.mxu0
        %v477 = vadd.f32 %v438, %v476
        %478 = vmatmul.bf16.gmra.mxu0 %v463
        %v479 = vpop.f32.mrf.mxu0
        %v480 = vadd.f32 %v441, %v479
        %v481 = vpop.f32.mrf.mxu0
        %v482 = vadd.f32 %v443, %v481
        %483 = vdwg.mxu0
        %486 = vrot.lane.b32.xlu0 %v404, 112
        %v487 = vpop.permute.xlu0 %486
        %488 = vrot.lane.b32.xlu0 %v405, 112
        %v489 = vpop.permute.xlu0 %488
        %v491 = vsel %vm260, %v487, 0
        %v494 = vsel %vm260, %v489, 0
        %496 = vmatpush.bf16.msra.mxu0 0
        %497 = vmatpush.bf16.msra.mxu0 0
        %498 = vmatpush.bf16.msra.mxu0 0
        %499 = vmatpush.bf16.msra.mxu0 0
        %500 = vmatpush.bf16.msra.mxu0 0
        %501 = vmatpush.bf16.msra.mxu0 0
        %502 = vmatpush.bf16.msra.mxu0 0
        %503 = vmatpush.bf16.msra.mxu0 %v258
        %504 = vmatmul.bf16.gmra.mxu0 %v491
        %v505 = vpop.f32.mrf.mxu0
        %v506 = vadd.f32 0.0, %v505
        %v507 = vpop.f32.mrf.mxu0
        %v508 = vadd.f32 0.0, %v507
        %509 = vmatmul.bf16.gmra.mxu0 %v494
        %v510 = vpop.f32.mrf.mxu0
        %v511 = vadd.f32 0.0, %v510
        %v512 = vpop.f32.mrf.mxu0
        %v513 = vadd.f32 0.0, %v512
        %514 = vdwg.mxu0
        %v515 = vadd.f32 %v475, %v506
        %v516 = vadd.f32 %v477, %v508
        %v517 = vadd.f32 %v480, %v511
        %v518 = vadd.f32 %v482, %v513
        %s519 = scalar_lea.vmem %s209, 64
        %520 = vst.msk [vmem:[%s519] sm:$0xff] %vm350, %v515
        %521 = vst.msk [vmem:[%s519 + $0x8] sm:$0xff] %vm350, %v516
        %522 = vst.msk [vmem:[%s519 + $0x10] sm:$0xff] %vm350, %v517
        %523 = vst.msk [vmem:[%s519 + $0x18] sm:$0xff] %vm350, %v518
        %528 = vrot.lane.b32.xlu0 %v515, 120
        %v529 = vpop.permute.xlu0 %528
        %530 = vrot.lane.b32.xlu0 %v516, 120
        %v531 = vpop.permute.xlu0 %530
        %532 = vrot.lane.b32.xlu0 %v517, 120
        %v533 = vpop.permute.xlu0 %532
        %534 = vrot.lane.b32.xlu0 %v518, 120
        %v535 = vpop.permute.xlu0 %534
        %s540 = scalar_lea.vmem %s209, 96
        %541 = vst.msk [vmem:[%s540] sm:$0xff] %vm350, %v529
        %542 = vst.msk [vmem:[%s540 + $0x8] sm:$0xff] %vm350, %v531
        %543 = vst.msk [vmem:[%s540 + $0x10] sm:$0xff] %vm350, %v533
        %544 = vst.msk [vmem:[%s540 + $0x18] sm:$0xff] %vm350, %v535
        %s545 = smul.u32 4, %s22
        %p546 = scmp.lt.s32.totalorder %s21, 1
        %s547 = scalar_select %p546, %s21, 1
        %p548 = scmp.lt.s32.totalorder %s545, 3
        %s549 = scalar_select %p548, %s545, 3
        %s550 = smul.addr %s547, 16
        %s551 = sadd.s32 %s549, %s550
        %s552 = smul.addr %s551, 8
        %s553 = scalar_lea.vmem %s2, %s552
        // Predicated region
        $region37: #{tpu_custom_call.1} parent=27 // pred_check
          %p554 = pneg %p98
        $region38: #{tpu_custom_call.1} parent=27 // pred_check_branch
          %556 = sbr.rel (%p554) target = $region40
        $region39: #{tpu_custom_call.1} parent=27 // pred_region
          %s557 = smul.u32 4, %s22
        $region40: #{tpu_custom_call.1} parent=27 // pred_fallthru
          _
      $region28: #{tpu_custom_call.1} parent=5 // pred_fallthru
        _
      %p558 = scmp.le.s32.totalorder 2, %s12
      // Predicated region
      $region41: #{tpu_custom_call.1} parent=5 // pred_check
        %p559 = pneg %p558
      $region42: #{tpu_custom_call.1} parent=5 // pred_check_branch
        %561 = sbr.rel (%p559) target = $region44
      $region43: #{tpu_custom_call.1} parent=5 // pred_region
        %s562 = ssub.s32 %s12, 2
        // Predicated region
        $region45: #{tpu_custom_call.1} parent=43 // pred_check
          %p563 = pneg %p104
        $region46: #{tpu_custom_call.1} parent=43 // pred_check_branch
          %565 = sbr.rel (%p563) target = $region48
        $region47: #{tpu_custom_call.1} parent=43 // pred_region
          %s566 = smul.u32 4, %s24
          %p567 = scmp.lt.s32.totalorder %s23, 1
          %s568 = scalar_select %p567, %s23, 1
          %p569 = scmp.lt.s32.totalorder %s566, 3
          %s570 = scalar_select %p569, %s566, 3
          %s571 = smul.addr %s568, 16
          %s572 = sadd.s32 %s570, %s571
          %s573 = smul.addr %s572, 8
          %s574 = scalar_lea.vmem %s2, %s573
        $region48: #{tpu_custom_call.1} parent=43 // pred_fallthru
          _
      $region44: #{tpu_custom_call.1} parent=5 // pred_fallthru
        _
    $region6: #{tpu_custom_call.1} parent=1 // loop_footer
      %s16 = sadd.s32 1, %s12
    $region7: #{tpu_custom_call.1} parent=1 // loop_footer_branch
      %11 = sbr.rel target = $region3
    $region8: #{tpu_custom_call.1} parent=1 // loop_exit
      _
    %575 = vsyncpa [#allocation3], 1
    %s576 = scalar_lea.sflag [#allocation3], 1
    %577 = vsyncpa %s576, 1
    %578 = vsyncpa [#allocation5], 1

</llo_original>
